<compile_context>
chip_gen: v7x
topology: tpu7x:2x2x1
jax: 0.10.0
libtpu: 0.0.40
codegen_flags: <defaults>
</compile_context>

<pallas_src>
import jax
import jax.numpy as jnp
from jax.experimental import pallas as pl
from jax.experimental.pallas import tpu as pltpu


def _round_up(x: int, m: int) -> int:
    return (x + m - 1) // m * m


def _vmem_capacity_bytes() -> int:
    """Physical VMEM per TensorCore; conservative fallback if unqueryable."""
    try:
        info = pltpu.get_tpu_info()
        cap = getattr(info, "vmem_capacity_bytes", None)
        if cap:
            return int(cap)
    except Exception:
        pass
    return 64 << 20  # v7x has the smallest VMEM (64 MiB per TensorCore)


# -----------------------------------------------------------------------------
# Kernels
# -----------------------------------------------------------------------------

def fc_single_block_kernel(x_ref, w_ref, o_ref):
    """Whole matmul in one VMEM block: o = x @ w (no grid, no padding)."""
    o_ref[...] = jnp.dot(
        x_ref[...], w_ref[...], preferred_element_type=jnp.float32
    ).astype(o_ref.dtype)


def fc_tiled_kernel_f32out(x_ref, w_ref, o_ref):
    """(tm, tn) tile; accumulate over the K grid axis (axis 2) directly into
    the f32 output block, which stays resident in VMEM because its index_map
    ignores k (K is the innermost, 'arbitrary' grid axis)."""
    @pl.when(pl.program_id(2) == 0)
    def _init():
        o_ref[...] = jnp.zeros_like(o_ref)

    o_ref[...] += jnp.dot(x_ref[...], w_ref[...],
                          preferred_element_type=jnp.float32)


def fc_tiled_kernel_acc(x_ref, w_ref, o_ref, acc_ref):
    """Same, but for non-f32 output dtypes: accumulate in an f32 VMEM scratch
    and cast once at the last K step."""
    @pl.when(pl.program_id(2) == 0)
    def _init():
        acc_ref[...] = jnp.zeros_like(acc_ref)

    acc_ref[...] += jnp.dot(x_ref[...], w_ref[...],
                            preferred_element_type=jnp.float32)

    @pl.when(pl.program_id(2) == pl.num_programs(2) - 1)
    def _finalize():
        o_ref[...] = acc_ref[...].astype(o_ref.dtype)


# -----------------------------------------------------------------------------
# Wrapper
# -----------------------------------------------------------------------------

_SMALL_PROBLEM_BYTES = 4 << 20  # x + FC + out below this -> single-block path


def fc_forward(x, w, *, tm=None, tn=None, tk=None, out_dtype=None):
    """FClayer.forward: output = x @ w."""
    M, K = x.shape
    Kw, N = w.shape
    assert K == Kw, f"inner dims mismatch: {K} vs {Kw}"

    out_dtype = jnp.dtype(out_dtype or x.dtype)
    x_elt = jnp.dtype(x.dtype).itemsize
    w_elt = jnp.dtype(w.dtype).itemsize
    o_elt = out_dtype.itemsize

    total_bytes = M * K * x_elt + K * N * w_elt + M * N * o_elt
    user_tiles = (tm is not None) or (tn is not None) or (tk is not None)

    # ---- Fast path: whole problem fits comfortably in VMEM (the real FClayer
    # shape 64x32x8 lands here).  Full-extent blocks, no pad, no slice. ------
    if not user_tiles and total_bytes <= _SMALL_PROBLEM_BYTES:
        return pl.pallas_call(
            fc_single_block_kernel,
            out_shape=jax.ShapeDtypeStruct((M, N), out_dtype),
            cost_estimate=pl.CostEstimate(
                flops=2 * M * N * K,
                transcendentals=0,
                bytes_accessed=total_bytes),
        )(x, w)

    # ---- General tiled path. -------------------------------------------------
    vmem_cap = int(0.75 * _vmem_capacity_bytes())   # ~48 MiB v7x, ~96 MiB v5e/v6e

    if tk is None:
        # Full-extent K (no pad, no K grid) when modest; otherwise a multiple
        # of 256 to match the MXU systolic depth on v6e/v7x.
        tk = K if K <= 2048 else min(1024, _round_up(K, 256))
    if tm is None:
        tm = min(512, _round_up(M, 8))
    if tn is None:
        tn = min(512, _round_up(N, 128))    # lane-dense output (unmasked vst)

    # Validate the (8, 128) BlockSpec rule (full-extent blocks are always ok).
    if not (tm % 8 == 0 or tm == M):
        raise ValueError(f"tm={tm} must be a multiple of 8 (or equal M={M})")
    if not (tn % 128 == 0 or tn == N):
        raise ValueError(f"tn={tn} must be a multiple of 128 (or equal N={N})")
    if not (tk % 128 == 0 or tk == K):
        raise ValueError(f"tk={tk} must be a multiple of 128 (or equal K={K})")

    Mp, Kp, Np = _round_up(M, tm), _round_up(K, tk), _round_up(N, tn)

    # v7x has 2 TensorCores: make sure there are >= 2 parallel (i, j) grid
    # steps when the problem is big enough to split (negligible cost on 1-TC).
    if not user_tiles and (Mp // tm) * (Np // tn) == 1 and M > 256:
        tm = _round_up((tm + 1) // 2, 8)
        Mp = _round_up(M, tm)

    xp = x if (Mp, Kp) == (M, K) else jnp.pad(x, ((0, Mp - M), (0, Kp - K)))
    wp = w if (Kp, Np) == (K, N) else jnp.pad(w, ((0, Kp - K), (0, Np - N)))
    grid = (Mp // tm, Np // tn, Kp // tk)

    f32_out = out_dtype == jnp.float32

    # Per-step VMEM: double-buffered x / w / out tiles (+ f32 scratch if the
    # output is narrow), with 25% headroom, checked against the real budget.
    vmem_bytes = 2 * (tm * tk * x_elt + tk * tn * w_elt + tm * tn * o_elt)
    if not f32_out:
        vmem_bytes += tm * tn * 4
    vmem_req = int(1.25 * vmem_bytes)
    if vmem_req > vmem_cap:
        raise ValueError(
            f"tile working set ~{vmem_bytes} B exceeds the VMEM budget "
            f"{vmem_cap} B on this part; choose smaller tm/tn/tk")
    vmem_limit = min(max(vmem_req, 16 << 20), vmem_cap)

    kernel = fc_tiled_kernel_f32out if f32_out else fc_tiled_kernel_acc
    scratch = [] if f32_out else [pltpu.VMEM((tm, tn), jnp.float32)]

    out_padded = pl.pallas_call(
        kernel,
        out_shape=jax.ShapeDtypeStruct((Mp, Np), out_dtype),
        grid_spec=pltpu.PrefetchScalarGridSpec(
            num_scalar_prefetch=0,
            grid=grid,
            in_specs=[
                pl.BlockSpec((tm, tk), lambda i, j, k: (i, k)),   # input tile
                pl.BlockSpec((tk, tn), lambda i, j, k: (k, j)),   # FC weight tile
            ],
            out_specs=pl.BlockSpec((tm, tn), lambda i, j, k: (i, j)),
            scratch_shapes=scratch,
        ),
        compiler_params=pltpu.CompilerParams(
            dimension_semantics=("parallel", "parallel", "arbitrary"),
            vmem_limit_bytes=vmem_limit,
        ),
        cost_estimate=pl.CostEstimate(
            flops=2 * Mp * Np * Kp,
            transcendentals=0,
            bytes_accessed=Mp * Kp * x_elt + Kp * Np * w_elt + Mp * Np * o_elt),
    )(xp, wp)

    return out_padded if (Mp, Np) == (M, N) else out_padded[:M, :N]


def fc_reference(x, w):
    """Pure-JAX reference for FClayer.forward."""
    return jnp.dot(x, w, preferred_element_type=jnp.float32)


if __name__ == "__main__":
    key = jax.random.PRNGKey(0)
    k_x, k_w, k_x2, k_w2 = jax.random.split(key, 4)

    # ---- 1) The actual FClayer shape: FClayer(in_fea=32, out_class=8) on a
    #         batch of 64 inputs.  Hits the single-block fast path. ----------
    batch, in_fea, out_class = 64, 32, 8
    x = jax.random.normal(k_x, (batch, in_fea), jnp.float32)
    # reset_parameters(): FC ~ uniform(-stdv, stdv), stdv = 1/sqrt(out_class).
    stdv = 1.0 / (out_class ** 0.5)
    fc = jax.random.uniform(k_w, (in_fea, out_class), jnp.float32, -stdv, stdv)

    out = jax.block_until_ready(fc_forward(x, fc))
    ref = jax.block_until_ready(fc_reference(x, fc))
    assert out.shape == (batch, out_class)
    # Tolerance covers the MXU's default (bf16-operand) precision for f32
    # inputs; the bf16-input check below is held to a tight 1e-3.
    assert bool(jnp.allclose(out, ref, rtol=2e-2, atol=2e-2)), "small-path mismatch"

    # ---- 2) Exercise the tiled path (explicit tiles, bf16 inputs, f32 out),
    #         where MXU products are exact so comparison is tight. -----------
    M2, K2, N2 = 512, 512, 512
    x2 = jax.random.normal(k_x2, (M2, K2), jnp.bfloat16)
    w2 = jax.random.normal(k_w2, (K2, N2), jnp.bfloat16)
    out2 = jax.block_until_ready(
        fc_forward(x2, w2, tm=256, tn=256, tk=256, out_dtype=jnp.float32))
    ref2 = jax.block_until_ready(fc_reference(x2, w2))
    assert out2.shape == (M2, N2)
    assert bool(jnp.allclose(out2, ref2, rtol=1e-3, atol=1e-3)), "tiled-path mismatch"

    print("KERNEL_OK")
</pallas_src>

<mosaic_0001>
module attributes {stable_mosaic.version = 11 : i64} {
  func.func @fc_single_block_kernel(%arg0: memref<64x32xf32, #tpu.memory_space<vmem>>, %arg1: memref<32x8xf32, #tpu.memory_space<vmem>>, %arg2: memref<64x8xf32, #tpu.memory_space<vmem>>) attributes {dimension_semantics = [], scalar_prefetch = 0 : i64, scratch_operands = 0 : i64, tpu.core_type = #tpu.core_type<tc>} {
    %c0 = arith.constant 0 : index
    %c0_0 = arith.constant 0 : index
    %0 = vector.load %arg0[%c0, %c0_0] : memref<64x32xf32, #tpu.memory_space<vmem>>, vector<64x32xf32>
    %c0_1 = arith.constant 0 : index
    %c0_2 = arith.constant 0 : index
    %1 = vector.load %arg1[%c0_1, %c0_2] : memref<32x8xf32, #tpu.memory_space<vmem>>, vector<32x8xf32>
    %cst = arith.constant dense<0.000000e+00> : vector<64x8xf32>
    %2 = tpu.matmul %0, %1, %cst {dimension_numbers = #tpu.dot_dimension_numbers<[1], [0], [0], [1], [0, 0, 1, 1], [], []>} : vector<64x32xf32>, vector<32x8xf32>, vector<64x8xf32> -> vector<64x8xf32>
    %c0_3 = arith.constant 0 : index
    %c0_4 = arith.constant 0 : index
    %3 = vector.load %arg2[%c0_3, %c0_4] : memref<64x8xf32, #tpu.memory_space<vmem>>, vector<64x8xf32>
    tpu.vector_store %arg2[%c0_3, %c0_4], %2 {strides = array<i32>} : memref<64x8xf32, #tpu.memory_space<vmem>>, vector<64x8xf32>,
    return
  }
}

</mosaic_0001>

<llo_original>
// kernel: tpu_custom_call.1
$region0: #{tpu_custom_call.1}
  #allocation0 [shape = 'u32[]', space=smem, size = 0x4, offset = 0x4, fixed_abs, tag = 'smem constant byte address 0x4 - core index']
  #allocation1 [shape = 'u32[144,128]{1,0:T(1,128)}', space=vmem, size = 0x12000, scoped, tag = 'internal scratch']
  %s0 = inlined_call_operand.vmem [shape: f32[64,32], index: 0, kind: input, shape index: {}]
  %s1 = inlined_call_operand.vmem [shape: f32[32,8], index: 1, kind: input, shape index: {}]
  %s2 = inlined_call_operand.vmem [shape: f32[64,8], index: 2, kind: output, shape index: {}]
  %s3 = sld [smem:[#allocation0]]
  $region18: #{tpu_custom_call.1} parent=0
    _
  %s5 = ssub.s32 1, %s3
  %s6 = scalar_select 0, %s5, %s3
  // Predicated region
  $region2: #{tpu_custom_call.1} parent=0 // pred_check
    _
  $region3: #{tpu_custom_call.1} parent=0 // pred_check_branch
    %8 = sbr.rel (0) target = $region5
  $region4: #{tpu_custom_call.1} parent=0 // pred_region
    _
  $region5: #{tpu_custom_call.1} parent=0 // pred_fallthru
    _
  // Predicated region
  $region6: #{tpu_custom_call.1} parent=0 // pred_check
    _
  $region7: #{tpu_custom_call.1} parent=0 // pred_check_branch
    %10 = sbr.rel (0) target = $region9
  $region8: #{tpu_custom_call.1} parent=0 // pred_region
    _
  $region9: #{tpu_custom_call.1} parent=0 // pred_fallthru
    _
  %v11 = vld [vmem:[%s0] sm:$0xff]
  %v12 = vld [vmem:[%s0 + $0x8] sm:$0xff]
  %v13 = vld [vmem:[%s0 + $0x10] sm:$0xff]
  %v14 = vld [vmem:[%s0 + $0x18] sm:$0xff]
  %v15 = vld [vmem:[%s0 + $0x20] sm:$0xff]
  %v16 = vld [vmem:[%s0 + $0x28] sm:$0xff]
  %v17 = vld [vmem:[%s0 + $0x30] sm:$0xff]
  %v18 = vld [vmem:[%s0 + $0x38] sm:$0xff]
  %v19 = vld [vmem:[%s1] sm:$0xff]
  %v20 = vld [vmem:[%s1 + $0x8] sm:$0xff]
  %v21 = vld [vmem:[%s1 + $0x10] sm:$0xff]
  %v22 = vld [vmem:[%s1 + $0x18] sm:$0xff]
  %vm23 = vcmask 261120
  %v25 = vsel %vm23, %v11, 0
  %v28 = vsel %vm23, %v12, 0
  %v31 = vsel %vm23, %v13, 0
  %v34 = vsel %vm23, %v14, 0
  %v37 = vsel %vm23, %v15, 0
  %v40 = vsel %vm23, %v16, 0
  %v43 = vsel %vm23, %v17, 0
  %v46 = vsel %vm23, %v18, 0
  %48 = vmatprep.subr.mxu0 0.0
  %49 = vmatpush1.msra.mxu0 %v19
  %50 = vmatprep.subr.mxu0 0.0
  %51 = vmatpush1.msra.mxu0 %v20
  %52 = vmatprep.subr.mxu0 0.0
  %53 = vmatpush1.msra.mxu0 %v21
  %54 = vmatprep.subr.mxu0 0.0
  %55 = vmatpush1.msra.mxu0 %v22
  %56 = vmatprep.subr.mxu0 0.0
  %57 = vmatpush1.msra.mxu0 0.0
  %58 = vmatprep.subr.mxu0 0.0
  %59 = vmatpush1.msra.mxu0 0.0
  %60 = vmatprep.subr.mxu0 0.0
  %61 = vmatpush1.msra.mxu0 0.0
  %62 = vmatprep.subr.mxu0 0.0
  %63 = vmatpush1.msra.mxu0 0.0
  %64 = vmatprep.subr.mxu0 0.0
  %65 = vmatpush1.msra.mxu0 0.0
  %66 = vmatprep.subr.mxu0 0.0
  %67 = vmatpush1.msra.mxu0 0.0
  %68 = vmatprep.subr.mxu0 0.0
  %69 = vmatpush1.msra.mxu0 0.0
  %70 = vmatprep.subr.mxu0 0.0
  %71 = vmatpush1.msra.mxu0 0.0
  %72 = vmatprep.subr.mxu0 0.0
  %73 = vmatpush1.msra.mxu0 0.0
  %74 = vmatprep.subr.mxu0 0.0
  %75 = vmatpush1.msra.mxu0 0.0
  %76 = vmatprep.subr.mxu0 0.0
  %77 = vmatpush1.msra.mxu0 0.0
  %78 = vmatprep.subr.mxu0 0.0
  %79 = vmatpush1.msra.mxu0 0.0
  %80 = vmatprep.subr.mxu0 0.0
  %81 = vmatpush1.msra.mxu0 0.0
  %82 = vmatprep.subr.mxu0 0.0
  %83 = vmatpush1.msra.mxu0 0.0
  %84 = vmatprep.subr.mxu0 0.0
  %85 = vmatpush1.msra.mxu0 0.0
  %86 = vmatprep.subr.mxu0 0.0
  %87 = vmatpush1.msra.mxu0 0.0
  %88 = vmatprep.subr.mxu0 0.0
  %89 = vmatpush1.msra.mxu0 0.0
  %90 = vmatprep.subr.mxu0 0.0
  %91 = vmatpush1.msra.mxu0 0.0
  %92 = vmatprep.subr.mxu0 0.0
  %93 = vmatpush1.msra.mxu0 0.0
  %94 = vmatprep.subr.mxu0 0.0
  %95 = vmatpush1.msra.mxu0 0.0
  %96 = vmatprep.subr.mxu0 0.0
  %97 = vmatpush1.msra.mxu0 0.0
  %98 = vmatprep.subr.mxu0 0.0
  %99 = vmatpush1.msra.mxu0 0.0
  %100 = vmatprep.subr.mxu0 0.0
  %101 = vmatpush1.msra.mxu0 0.0
  %102 = vmatprep.subr.mxu0 0.0
  %103 = vmatpush1.msra.mxu0 0.0
  %104 = vmatprep.subr.mxu0 0.0
  %105 = vmatpush1.msra.mxu0 0.0
  %106 = vmatprep.subr.mxu0 0.0
  %107 = vmatpush1.msra.mxu0 0.0
  %108 = vmatprep.subr.mxu0 0.0
  %109 = vmatpush1.msra.mxu0 0.0
  %110 = vmatprep.subr.mxu0 0.0
  %111 = vmatpush1.msra.mxu0 0.0
  %112 = vmatprep.mubr.f32.mxu0 0.0
  %113 = vmatmul.mubr.f32.gmra.mrb[0].mxu0 %v25
  %v114 = vpop.f32.mrb[0].mxu0
  %v115 = vadd.f32 0.0, %v114
  %v116 = vpop.f32.mrb[0].mxu0
  %117 = vmatprep.mubr.f32.mxu0 0.0
  %118 = vmatmul.mubr.f32.gmra.mrb[0].mxu0 %v28
  %v119 = vpop.f32.mrb[0].mxu0
  %v120 = vadd.f32 0.0, %v119
  %v121 = vpop.f32.mrb[0].mxu0
  %122 = vmatprep.mubr.f32.mxu0 0.0
  %123 = vmatmul.mubr.f32.gmra.mrb[0].mxu0 %v31
  %v124 = vpop.f32.mrb[0].mxu0
  %v125 = vadd.f32 0.0, %v124
  %v126 = vpop.f32.mrb[0].mxu0
  %127 = vmatprep.mubr.f32.mxu0 0.0
  %128 = vmatmul.mubr.f32.gmra.mrb[0].mxu0 %v34
  %v129 = vpop.f32.mrb[0].mxu0
  %v130 = vadd.f32 0.0, %v129
  %v131 = vpop.f32.mrb[0].mxu0
  %132 = vmatprep.mubr.f32.mxu0 0.0
  %133 = vmatmul.mubr.f32.gmra.mrb[0].mxu0 %v37
  %v134 = vpop.f32.mrb[0].mxu0
  %v135 = vadd.f32 0.0, %v134
  %v136 = vpop.f32.mrb[0].mxu0
  %137 = vmatprep.mubr.f32.mxu0 0.0
  %138 = vmatmul.mubr.f32.gmra.mrb[0].mxu0 %v40
  %v139 = vpop.f32.mrb[0].mxu0
  %v140 = vadd.f32 0.0, %v139
  %v141 = vpop.f32.mrb[0].mxu0
  %142 = vmatprep.mubr.f32.mxu0 0.0
  %143 = vmatmul.mubr.f32.gmra.mrb[0].mxu0 %v43
  %v144 = vpop.f32.mrb[0].mxu0
  %v145 = vadd.f32 0.0, %v144
  %v146 = vpop.f32.mrb[0].mxu0
  %147 = vmatprep.mubr.f32.mxu0 0.0
  %148 = vmatmul.mubr.f32.gmra.mrb[0].mxu0 %v46
  %v149 = vpop.f32.mrb[0].mxu0
  %v150 = vadd.f32 0.0, %v149
  %v151 = vpop.f32.mrb[0].mxu0
  %152 = vdwg.mxu0
  %vm153 = vcmask 64512
  %154 = vst.msk [vmem:[%s2] sm:$0xff] %vm153, %v115
  %155 = vst.msk [vmem:[%s2 + $0x8] sm:$0xff] %vm153, %v120
  %156 = vst.msk [vmem:[%s2 + $0x10] sm:$0xff] %vm153, %v125
  %157 = vst.msk [vmem:[%s2 + $0x18] sm:$0xff] %vm153, %v130
  %158 = vst.msk [vmem:[%s2 + $0x20] sm:$0xff] %vm153, %v135
  %159 = vst.msk [vmem:[%s2 + $0x28] sm:$0xff] %vm153, %v140
  %160 = vst.msk [vmem:[%s2 + $0x30] sm:$0xff] %vm153, %v145
  %161 = vst.msk [vmem:[%s2 + $0x38] sm:$0xff] %vm153, %v150
  // Predicated region
  $region10: #{tpu_custom_call.1} parent=0 // pred_check
    _
  $region11: #{tpu_custom_call.1} parent=0 // pred_check_branch
    %163 = sbr.rel (0) target = $region13
  $region12: #{tpu_custom_call.1} parent=0 // pred_region
    _
  $region13: #{tpu_custom_call.1} parent=0 // pred_fallthru
    _
  // Predicated region
  $region14: #{tpu_custom_call.1} parent=0 // pred_check
    _
  $region15: #{tpu_custom_call.1} parent=0 // pred_check_branch
    %165 = sbr.rel (0) target = $region17
  $region16: #{tpu_custom_call.1} parent=0 // pred_region
    _
  $region17: #{tpu_custom_call.1} parent=0 // pred_fallthru
    _

</llo_original>
